<compile_context>
chip_gen: v6e
topology: v6e:2x2x1
jax: 0.10.0
libtpu: 0.0.40
codegen_flags: <defaults>
</compile_context>

<pallas_src>
import functools

import jax
import jax.numpy as jnp
import numpy as np
from jax.experimental import pallas as pl
from jax.experimental.pallas import tpu as pltpu

_LANE = 128
_SUBLANE = 8


def _dice_kernel(pred_ref, targ_ref, loss_ref, a_acc, b_acc, c_acc, *,
                 eps, loss_weight, n_features, tile_rows,
                 apply_sigmoid, naive_dice, need_mask):
    j = pl.program_id(1)

    @pl.when(j == 0)
    def _init():
        a_acc[...] = jnp.zeros_like(a_acc)
        b_acc[...] = jnp.zeros_like(b_acc)
        c_acc[...] = jnp.zeros_like(c_acc)

    p = pred_ref[...].astype(jnp.float32)   # (tile_rows, 128)
    t = targ_ref[...].astype(jnp.float32)
    if apply_sigmoid:
        p = jax.nn.sigmoid(p)

    if need_mask:
        # Mask zero-padded tail elements / garbage rows of a ragged last block.
        row = jax.lax.broadcasted_iota(jnp.int32, p.shape, 0)
        lane = jax.lax.broadcasted_iota(jnp.int32, p.shape, 1)
        flat = (j * tile_rows + row) * _LANE + lane
        valid = flat < n_features
        p = jnp.where(valid, p, 0.0)
        t = jnp.where(valid, t, 0.0)

    # Lane-resident elementwise accumulation (VALU only; co-issues with loads).
    a_acc[...] += p * t
    if naive_dice:
        b_acc[...] += p
        c_acc[...] += t
    else:
        b_acc[...] += p * p
        c_acc[...] += t * t

    @pl.when(j == pl.num_programs(1) - 1)
    def _finalize():
        # Single full (sublane + lane) reduction per sample.
        a = jnp.sum(a_acc[...], keepdims=True)   # (1, 1)
        b = jnp.sum(b_acc[...], keepdims=True)
        c = jnp.sum(c_acc[...], keepdims=True)
        if naive_dice:
            d = (2.0 * a + eps) / (b + c + eps)
        else:
            d = (2.0 * a) / ((b + eps) + (c + eps))
        loss_ref[...] = loss_weight * (1.0 - d)


def dice_loss_pallas(pred, target, *, use_sigmoid=True, activate=True,
                     naive_dice=False, eps=1e-3, loss_weight=1.0,
                     reduction='mean', weight=None, avg_factor=None,
                     reduction_override=None, tile_rows=512):
    """Pallas implementation of mmrotate DiceLoss.forward."""
    assert reduction_override in (None, 'none', 'mean', 'sum')
    reduction = reduction_override if reduction_override else reduction
    assert pred.shape == target.shape
    if activate and not use_sigmoid:
        raise NotImplementedError  # softmax path, as in the PyTorch module
    apply_sigmoid = bool(activate and use_sigmoid)

    n = pred.shape[0]
    pred2 = pred.reshape(n, -1)    # native dtype: no host-side f32 cast
    targ2 = target.reshape(n, -1)
    L = pred2.shape[1]

    # Rows per sample, rounded up to a sublane multiple so the 3-D view exists.
    Rp = pl.cdiv(pl.cdiv(L, _LANE), _SUBLANE) * _SUBLANE
    Lp = Rp * _LANE
    if Lp != L:
        # Only triggers when L % 1024 != 0; padded zeros are masked in-kernel.
        pred2 = jnp.pad(pred2, ((0, 0), (0, Lp - L)))
        targ2 = jnp.pad(targ2, ((0, 0), (0, Lp - L)))
    pred3 = pred2.reshape(n, Rp, _LANE)   # contiguous reshape: no data movement
    targ3 = targ2.reshape(n, Rp, _LANE)

    # Per-generation tunable: 512 rows * 128 lanes = 64K elems / block keeps
    # double-buffered inputs + accumulators < ~2 MiB f32 (fits v5e/v6e/v7x).
    tile_rows = max(_SUBLANE, (int(tile_rows) // _SUBLANE) * _SUBLANE)
    tile_rows = min(tile_rows, Rp)
    num_tiles = pl.cdiv(Rp, tile_rows)
    need_mask = (Lp != L) or (Rp % tile_rows != 0)

    kernel = functools.partial(
        _dice_kernel,
        eps=float(eps), loss_weight=float(loss_weight),
        n_features=int(L), tile_rows=int(tile_rows),
        apply_sigmoid=apply_sigmoid, naive_dice=bool(naive_dice),
        need_mask=bool(need_mask))

    per_sample = pl.pallas_call(
        kernel,
        out_shape=jax.ShapeDtypeStruct((n, 1, 1), jnp.float32),
        grid_spec=pltpu.PrefetchScalarGridSpec(
            num_scalar_prefetch=0,
            grid=(n, num_tiles),
            in_specs=[
                pl.BlockSpec((None, tile_rows, _LANE), lambda i, j: (i, j, 0)),
                pl.BlockSpec((None, tile_rows, _LANE), lambda i, j: (i, j, 0)),
            ],
            out_specs=pl.BlockSpec((None, 1, 1), lambda i, j: (i, 0, 0)),
            scratch_shapes=[pltpu.VMEM((tile_rows, _LANE), jnp.float32)] * 3,
        ),
        compiler_params=pltpu.CompilerParams(
            dimension_semantics=("parallel", "arbitrary")),
    )(pred3, targ3)

    loss = per_sample.reshape(n)   # per-sample loss, loss_weight already applied

    # weight_reduce_loss semantics: O(n) scalar epilogue in plain JAX.
    if weight is not None:
        loss = loss * jnp.asarray(weight, jnp.float32).reshape(n)
    if avg_factor is None:
        if reduction == 'mean':
            return jnp.mean(loss)
        if reduction == 'sum':
            return jnp.sum(loss)
        if reduction == 'none':
            return loss
        raise ValueError(f'invalid reduction: {reduction}')
    if reduction == 'mean':
        return jnp.sum(loss) / (avg_factor + float(np.finfo(np.float32).eps))
    if reduction == 'none':
        return loss
    raise ValueError('avg_factor can not be used with reduction="sum"')


def _ref_dice_loss(pred, target, *, use_sigmoid=True, activate=True,
                   naive_dice=False, eps=1e-3, loss_weight=1.0,
                   reduction='mean', weight=None, avg_factor=None):
    """Pure-JAX reference (same math as the PyTorch module)."""
    p = pred.astype(jnp.float32)
    if activate and use_sigmoid:
        p = jax.nn.sigmoid(p)
    n = p.shape[0]
    p = p.reshape(n, -1)
    t = target.astype(jnp.float32).reshape(n, -1)
    a = jnp.sum(p * t, axis=1)
    if naive_dice:
        b = jnp.sum(p, axis=1)
        c = jnp.sum(t, axis=1)
        d = (2.0 * a + eps) / (b + c + eps)
    else:
        b = jnp.sum(p * p, axis=1) + eps
        c = jnp.sum(t * t, axis=1) + eps
        d = 2.0 * a / (b + c)
    loss = loss_weight * (1.0 - d)
    if weight is not None:
        loss = loss * weight
    if avg_factor is not None:
        return jnp.sum(loss) / (avg_factor + float(np.finfo(np.float32).eps))
    if reduction == 'mean':
        return jnp.mean(loss)
    if reduction == 'sum':
        return jnp.sum(loss)
    return loss


if __name__ == "__main__":
    key = jax.random.PRNGKey(0)
    k1, k2, k3, k4 = jax.random.split(key, 4)

    # Test 1: module defaults (sigmoid, non-naive dice, mean reduction), NCHW.
    pred = jax.random.normal(k1, (2, 4, 16, 16), dtype=jnp.float32)
    target = (jax.random.uniform(k2, (2, 4, 16, 16)) > 0.5).astype(jnp.float32)
    out = jax.block_until_ready(dice_loss_pallas(pred, target))
    ref = _ref_dice_loss(pred, target)
    np.testing.assert_allclose(np.asarray(out), np.asarray(ref),
                               rtol=1e-5, atol=1e-5)

    # Test 2: naive_dice=True path.
    out2 = jax.block_until_ready(dice_loss_pallas(pred, target, naive_dice=True))
    ref2 = _ref_dice_loss(pred, target, naive_dice=True)
    np.testing.assert_allclose(np.asarray(out2), np.asarray(ref2),
                               rtol=1e-5, atol=1e-5)

    # Test 3: ragged feature length (in-kernel mask path) + per-sample weight,
    # reduction='none'.
    pred_r = jax.random.normal(k3, (3, 3, 10, 10), dtype=jnp.float32)
    targ_r = (jax.random.uniform(k4, (3, 3, 10, 10)) > 0.5).astype(jnp.float32)
    w = jnp.array([0.5, 1.0, 2.0], dtype=jnp.float32)
    out3 = jax.block_until_ready(
        dice_loss_pallas(pred_r, targ_r, weight=w, reduction='none'))
    ref3 = _ref_dice_loss(pred_r, targ_r, weight=w, reduction='none')
    np.testing.assert_allclose(np.asarray(out3), np.asarray(ref3),
                               rtol=1e-5, atol=1e-5)

    print("KERNEL_OK")
</pallas_src>

<mosaic_0001>
module attributes {stable_mosaic.version = 11 : i64} {
  func.func @_dice_kernel(%arg0: i32, %arg1: i32, %arg2: memref<1x8x128xf32, #tpu.memory_space<vmem>>, %arg3: memref<1x8x128xf32, #tpu.memory_space<vmem>>, %arg4: memref<1x1x1xf32, #tpu.memory_space<vmem>>, %arg5: memref<8x128xf32, #tpu.memory_space<vmem>>, %arg6: memref<8x128xf32, #tpu.memory_space<vmem>>, %arg7: memref<8x128xf32, #tpu.memory_space<vmem>>) attributes {dimension_semantics = [#tpu.dimension_semantics<parallel>, #tpu.dimension_semantics<arbitrary>], iteration_bounds = array<i64: 2, 1>, scalar_prefetch = 0 : i64, scratch_operands = 3 : i64, tpu.core_type = #tpu.core_type<tc>, window_params = [{transform_indices = @transform_0, window_bounds = array<i64: 1, 8, 128>}, {transform_indices = @transform_1, window_bounds = array<i64: 1, 8, 128>}, {transform_indices = @transform_2, window_bounds = array<i64: 1, 1, 1>}]} {
    %c0_i32 = arith.constant 0 : i32
    %0 = arith.cmpi eq, %arg1, %c0_i32 : i32
    %1 = arith.extui %0 : i1 to i32
    %c0_i32_0 = arith.constant 0 : i32
    %2 = arith.cmpi ne, %1, %c0_i32_0 : i32
    scf.if %2 {
      %cst_20 = arith.constant 0.000000e+00 : f32
      %27 = vector.broadcast %cst_20 : f32 to vector<8x128xf32>
      %c0_21 = arith.constant 0 : index
      %c0_22 = arith.constant 0 : index
      %28 = vector.load %arg5[%c0_21, %c0_22] : memref<8x128xf32, #tpu.memory_space<vmem>>, vector<8x128xf32>
      tpu.vector_store %arg5[%c0_21, %c0_22], %27 {strides = array<i32>} : memref<8x128xf32, #tpu.memory_space<vmem>>, vector<8x128xf32>,
      %cst_23 = arith.constant 0.000000e+00 : f32
      %29 = vector.broadcast %cst_23 : f32 to vector<8x128xf32>
      %c0_24 = arith.constant 0 : index
      %c0_25 = arith.constant 0 : index
      %30 = vector.load %arg6[%c0_24, %c0_25] : memref<8x128xf32, #tpu.memory_space<vmem>>, vector<8x128xf32>
      tpu.vector_store %arg6[%c0_24, %c0_25], %29 {strides = array<i32>} : memref<8x128xf32, #tpu.memory_space<vmem>>, vector<8x128xf32>,
      %cst_26 = arith.constant 0.000000e+00 : f32
      %31 = vector.broadcast %cst_26 : f32 to vector<8x128xf32>
      %c0_27 = arith.constant 0 : index
      %c0_28 = arith.constant 0 : index
      %32 = vector.load %arg7[%c0_27, %c0_28] : memref<8x128xf32, #tpu.memory_space<vmem>>, vector<8x128xf32>
      tpu.vector_store %arg7[%c0_27, %c0_28], %31 {strides = array<i32>} : memref<8x128xf32, #tpu.memory_space<vmem>>, vector<8x128xf32>,
    } else {
    }
    %c0 = arith.constant 0 : index
    %c0_1 = arith.constant 0 : index
    %c0_2 = arith.constant 0 : index
    %3 = vector.load %arg2[%c0, %c0_1, %c0_2] : memref<1x8x128xf32, #tpu.memory_space<vmem>>, vector<1x8x128xf32>
    %4 = vector.shape_cast %3 : vector<1x8x128xf32> to vector<8x128xf32>
    %c0_3 = arith.constant 0 : index
    %c0_4 = arith.constant 0 : index
    %c0_5 = arith.constant 0 : index
    %5 = vector.load %arg3[%c0_3, %c0_4, %c0_5] : memref<1x8x128xf32, #tpu.memory_space<vmem>>, vector<1x8x128xf32>
    %6 = vector.shape_cast %5 : vector<1x8x128xf32> to vector<8x128xf32>
    %7 = arith.negf %4 : vector<8x128xf32>
    %8 = math.exp %7 : vector<8x128xf32>
    %cst = arith.constant 1.000000e+00 : f32
    %9 = vector.broadcast %cst : f32 to vector<8x128xf32>
    %10 = arith.addf %9, %8 : vector<8x128xf32>
    %11 = arith.divf %9, %10 : vector<8x128xf32>
    %c0_6 = arith.constant 0 : index
    %c0_7 = arith.constant 0 : index
    %12 = vector.load %arg5[%c0_6, %c0_7] : memref<8x128xf32, #tpu.memory_space<vmem>>, vector<8x128xf32>
    %13 = arith.mulf %11, %6 : vector<8x128xf32>
    %14 = arith.addf %12, %13 : vector<8x128xf32>
    %c0_8 = arith.constant 0 : index
    %c0_9 = arith.constant 0 : index
    %15 = vector.load %arg5[%c0_8, %c0_9] : memref<8x128xf32, #tpu.memory_space<vmem>>, vector<8x128xf32>
    tpu.vector_store %arg5[%c0_8, %c0_9], %14 {strides = array<i32>} : memref<8x128xf32, #tpu.memory_space<vmem>>, vector<8x128xf32>,
    %c0_10 = arith.constant 0 : index
    %c0_11 = arith.constant 0 : index
    %16 = vector.load %arg6[%c0_10, %c0_11] : memref<8x128xf32, #tpu.memory_space<vmem>>, vector<8x128xf32>
    %17 = arith.mulf %11, %11 : vector<8x128xf32>
    %18 = arith.addf %16, %17 : vector<8x128xf32>
    %c0_12 = arith.constant 0 : index
    %c0_13 = arith.constant 0 : index
    %19 = vector.load %arg6[%c0_12, %c0_13] : memref<8x128xf32, #tpu.memory_space<vmem>>, vector<8x128xf32>
    tpu.vector_store %arg6[%c0_12, %c0_13], %18 {strides = array<i32>} : memref<8x128xf32, #tpu.memory_space<vmem>>, vector<8x128xf32>,
    %c0_14 = arith.constant 0 : index
    %c0_15 = arith.constant 0 : index
    %20 = vector.load %arg7[%c0_14, %c0_15] : memref<8x128xf32, #tpu.memory_space<vmem>>, vector<8x128xf32>
    %21 = arith.mulf %6, %6 : vector<8x128xf32>
    %22 = arith.addf %20, %21 : vector<8x128xf32>
    %c0_16 = arith.constant 0 : index
    %c0_17 = arith.constant 0 : index
    %23 = vector.load %arg7[%c0_16, %c0_17] : memref<8x128xf32, #tpu.memory_space<vmem>>, vector<8x128xf32>
    tpu.vector_store %arg7[%c0_16, %c0_17], %22 {strides = array<i32>} : memref<8x128xf32, #tpu.memory_space<vmem>>, vector<8x128xf32>,
    %c0_i32_18 = arith.constant 0 : i32
    %24 = arith.cmpi eq, %arg1, %c0_i32_18 : i32
    %25 = arith.extui %24 : i1 to i32
    %c0_i32_19 = arith.constant 0 : i32
    %26 = arith.cmpi ne, %25, %c0_i32_19 : i32
    scf.if %26 {
      %c0_20 = arith.constant 0 : index
      %c0_21 = arith.constant 0 : index
      %27 = vector.load %arg5[%c0_20, %c0_21] : memref<8x128xf32, #tpu.memory_space<vmem>>, vector<8x128xf32>
      %28 = vector.shape_cast %27 : vector<8x128xf32> to vector<1x8x128xf32>
      %cst_22 = arith.constant dense<0.000000e+00> : vector<1xf32>
      %29 = vector.multi_reduction <add>, %28, %cst_22 [1, 2] : vector<1x8x128xf32> to vector<1xf32>
      %30 = vector.shape_cast %29 : vector<1xf32> to vector<1x1x1xf32>
      %31 = vector.extract %30[0, 0, 0] : f32 from vector<1x1x1xf32>
      %32 = vector.broadcast %31 : f32 to vector<1x1xf32>
      %c0_23 = arith.constant 0 : index
      %c0_24 = arith.constant 0 : index
      %33 = vector.load %arg6[%c0_23, %c0_24] : memref<8x128xf32, #tpu.memory_space<vmem>>, vector<8x128xf32>
      %34 = vector.shape_cast %33 : vector<8x128xf32> to vector<1x8x128xf32>
      %cst_25 = arith.constant dense<0.000000e+00> : vector<1xf32>
      %35 = vector.multi_reduction <add>, %34, %cst_25 [1, 2] : vector<1x8x128xf32> to vector<1xf32>
      %36 = vector.shape_cast %35 : vector<1xf32> to vector<1x1x1xf32>
      %37 = vector.extract %36[0, 0, 0] : f32 from vector<1x1x1xf32>
      %38 = vector.broadcast %37 : f32 to vector<1x1xf32>
      %c0_26 = arith.constant 0 : index
      %c0_27 = arith.constant 0 : index
      %39 = vector.load %arg7[%c0_26, %c0_27] : memref<8x128xf32, #tpu.memory_space<vmem>>, vector<8x128xf32>
      %40 = vector.shape_cast %39 : vector<8x128xf32> to vector<1x8x128xf32>
      %cst_28 = arith.constant dense<0.000000e+00> : vector<1xf32>
      %41 = vector.multi_reduction <add>, %40, %cst_28 [1, 2] : vector<1x8x128xf32> to vector<1xf32>
      %42 = vector.shape_cast %41 : vector<1xf32> to vector<1x1x1xf32>
      %43 = vector.extract %42[0, 0, 0] : f32 from vector<1x1x1xf32>
      %44 = vector.broadcast %43 : f32 to vector<1x1xf32>
      %cst_29 = arith.constant 2.000000e+00 : f32
      %45 = vector.broadcast %cst_29 : f32 to vector<1x1xf32>
      %46 = arith.mulf %45, %32 : vector<1x1xf32>
      %cst_30 = arith.constant 1.000000e-03 : f32
      %47 = vector.broadcast %cst_30 : f32 to vector<1x1xf32>
      %48 = arith.addf %38, %47 : vector<1x1xf32>
      %cst_31 = arith.constant 1.000000e-03 : f32
      %49 = vector.broadcast %cst_31 : f32 to vector<1x1xf32>
      %50 = arith.addf %44, %49 : vector<1x1xf32>
      %51 = arith.addf %48, %50 : vector<1x1xf32>
      %52 = arith.divf %46, %51 : vector<1x1xf32>
      %cst_32 = arith.constant 1.000000e+00 : f32
      %53 = vector.broadcast %cst_32 : f32 to vector<1x1xf32>
      %54 = arith.subf %53, %52 : vector<1x1xf32>
      %cst_33 = arith.constant 1.000000e+00 : f32
      %55 = vector.broadcast %cst_33 : f32 to vector<1x1xf32>
      %56 = arith.mulf %55, %54 : vector<1x1xf32>
      %c0_34 = arith.constant 0 : index
      %c0_35 = arith.constant 0 : index
      %c0_36 = arith.constant 0 : index
      %57 = vector.load %arg4[%c0_34, %c0_35, %c0_36] : memref<1x1x1xf32, #tpu.memory_space<vmem>>, vector<1x1x1xf32>
      %58 = vector.shape_cast %57 : vector<1x1x1xf32> to vector<1x1xf32>
      %59 = vector.shape_cast %56 : vector<1x1xf32> to vector<1x1x1xf32>
      tpu.vector_store %arg4[%c0_34, %c0_35, %c0_36], %59 {strides = array<i32>} : memref<1x1x1xf32, #tpu.memory_space<vmem>>, vector<1x1x1xf32>,
    } else {
    }
    return
  }
  func.func @transform_0(%arg0: i32, %arg1: i32) -> (i32, i32, i32) {
    %c0_i32 = arith.constant 0 : i32
    %c0_i32_0 = arith.constant 0 : i32
    return %arg0, %arg1, %c0_i32 : i32, i32, i32
  }
  func.func @transform_1(%arg0: i32, %arg1: i32) -> (i32, i32, i32) {
    %c0_i32 = arith.constant 0 : i32
    %c0_i32_0 = arith.constant 0 : i32
    return %arg0, %arg1, %c0_i32 : i32, i32, i32
  }
  func.func @transform_2(%arg0: i32, %arg1: i32) -> (i32, i32, i32) {
    %c0_i32 = arith.constant 0 : i32
    %c0_i32_0 = arith.constant 0 : i32
    %c0_i32_1 = arith.constant 0 : i32
    return %arg0, %c0_i32, %c0_i32_0 : i32, i32, i32
  }
}

</mosaic_0001>

<llo_original>
// kernel: tpu_custom_call.1
$region0: #{tpu_custom_call.1}
  #allocation0 [shape = 'u32[]', space=smem, size = 0x4, offset = 0x4, fixed_abs, tag = 'smem constant byte address 0x4 - core index']
  #allocation1 [shape = 'u32[144,128]{1,0:T(1,128)}', space=vmem, size = 0x12000, scoped, tag = 'internal scratch']
  #allocation2 [shape = 'f32[8,128]{1,0:T(8,128)}', space=vmem, size = 0x1000, scoped, tag = 'scratch operand']
  #allocation3 [shape = 'f32[8,128]{1,0:T(8,128)}', space=vmem, size = 0x1000, scoped, tag = 'scratch operand']
  #allocation4 [shape = 'f32[8,128]{1,0:T(8,128)}', space=vmem, size = 0x1000, scoped, tag = 'scratch operand']
  %s0 = inlined_call_operand.hbm [shape: f32[2,8,128], index: 0, kind: input, shape index: {}]
  %s1 = inlined_call_operand.hbm [shape: f32[2,8,128], index: 1, kind: input, shape index: {}]
  %s2 = inlined_call_operand.vmem [shape: f32[2,1,1], index: 2, kind: output, shape index: {}]
  %s3 = sld [smem:[#allocation0]]
  $region57: #{tpu_custom_call.1} parent=0
    _
  %s5 = ssub.s32 1, %s3
  %s6 = scalar_select 0, %s5, %s3
  $region1: #{tpu_custom_call.1} parent=0
    #allocation5 [shape = 'u8[8192]{0}', space=vmem, size = 0x2000, scoped, tag = 'input window, operand 0']
    #allocation6 [shape = 's32[2]{0}', space=sflag, size = 0x8, scoped, tag = 'scoped memory for tpu_custom_call.1']
    #allocation7 [shape = 'u8[8192]{0}', space=vmem, size = 0x2000, scoped, tag = 'input window, operand 1']
    #allocation8 [shape = 's32[2]{0}', space=sflag, size = 0x8, scoped, tag = 'scoped memory for tpu_custom_call.1']
    %7 = vsyncpa [#allocation6], 0
    %s8 = scalar_lea.sflag [#allocation6], 1
    %9 = vsyncpa %s8, 0
    %10 = vsyncpa [#allocation8], 0
    %s11 = scalar_lea.sflag [#allocation8], 1
    %12 = vsyncpa %s11, 0
    loop: start=0, step=1, limit=4
    $region2: #{tpu_custom_call.1} parent=1 // loop_pre_header
      _
    $region3: #{tpu_custom_call.1} parent=1 // loop_header
      %s14 = sphi 0, %s18
      %p15 = scmp.ge.s32.totalorder %s14, 4
      %s21 = sphi 0, %s33
      %s22 = sphi 0, %s29
      %s23 = sphi 0, %s21
      %s24 = sphi 0, %s22
      %s25 = sphi 0, %s23
      %s26 = sphi 0, %s24
      %s38 = sphi 0, %s40
      %s41 = sphi 0, %s38
      %s42 = sphi 0, %s41
      %s58 = sphi 0, %s42
      %s66 = sphi 0, %s68
      %s69 = sphi 0, %s66
      %s70 = sphi 0, %s69
      %s86 = sphi 0, %s70
      %s92 = sphi 0, %s94
      %s95 = sphi 0, %s92
      %s96 = sphi 0, %s95
      %s112 = sphi 0, %s96
    $region4: #{tpu_custom_call.1} parent=1 // loop_header_branch
      %17 = sbr.rel (%p15) target = $region8
    $region5: #{tpu_custom_call.1} parent=1 // loop_body
      %s19 = ssub.s32 %s14, 1
      %s20 = ssub.s32 %s14, 2
      %s27 = sadd.s32 1, %s22
      %p28 = scmp.ge.s32.totalorder %s27, 1
      %s29 = scalar_select %p28, 0, %s27
      %s30 = sadd.s32 1, %s21
      %s31 = scalar_select %p28, %s30, %s21
      %p32 = scmp.ge.s32.totalorder %s31, 2
      %s33 = scalar_select %p32, 0, %s31
      %s34 = ssub.s32 %s21, %s33
      %s35 = ssub.s32 %s22, %s29
      %s36 = sor.u32 %s34, %s35
      %p37 = scmp.eq.s32.totalorder %s36, 0
      %s39 = sadd.s32 %s38, 1
      %s40 = scalar_select %p37, %s38, %s39
      %p43 = pneg %p37
      %p44 = scmp.eq.s32.totalorder %s14, 1
      %p45 = por %p43, %p44
      %p46 = scmp.ne.s32.totalorder %s38, %s41
      %p47 = scmp.eq.s32.totalorder %s14, 0
      %p48 = por %p46, %p47
      %p49 = scmp.ne.s32.totalorder %s38, %s41
      %p50 = scmp.eq.s32.totalorder %s19, 1
      %p51 = por %p49, %p50
      %p52 = scmp.ne.s32.totalorder %s41, %s42
      %p53 = scmp.eq.s32.totalorder %s19, 0
      %p54 = por %p52, %p53
      %p55 = scmp.ne.s32.totalorder %s41, %s42
      %p56 = scmp.eq.s32.totalorder %s20, 1
      %p57 = por %p55, %p56
      %p59 = scmp.ne.s32.totalorder %s42, %s58
      %p60 = scmp.eq.s32.totalorder %s20, 0
      %p61 = por %p59, %p60
      %s62 = ssub.s32 %s21, %s33
      %s63 = ssub.s32 %s22, %s29
      %s64 = sor.u32 %s62, %s63
      %p65 = scmp.eq.s32.totalorder %s64, 0
      %s67 = sadd.s32 %s66, 1
      %s68 = scalar_select %p65, %s66, %s67
      %p71 = pneg %p65
      %p72 = scmp.eq.s32.totalorder %s14, 1
      %p73 = por %p71, %p72
      %p74 = scmp.ne.s32.totalorder %s66, %s69
      %p75 = scmp.eq.s32.totalorder %s14, 0
      %p76 = por %p74, %p75
      %p77 = scmp.ne.s32.totalorder %s66, %s69
      %p78 = scmp.eq.s32.totalorder %s19, 1
      %p79 = por %p77, %p78
      %p80 = scmp.ne.s32.totalorder %s69, %s70
      %p81 = scmp.eq.s32.totalorder %s19, 0
      %p82 = por %p80, %p81
      %p83 = scmp.ne.s32.totalorder %s69, %s70
      %p84 = scmp.eq.s32.totalorder %s20, 1
      %p85 = por %p83, %p84
      %p87 = scmp.ne.s32.totalorder %s70, %s86
      %p88 = scmp.eq.s32.totalorder %s20, 0
      %p89 = por %p87, %p88
      %s90 = ssub.s32 %s21, %s33
      %p91 = scmp.eq.s32.totalorder %s90, 0
      %s93 = sadd.s32 %s92, 1
      %s94 = scalar_select %p91, %s92, %s93
      %p97 = pneg %p91
      %p98 = scmp.eq.s32.totalorder %s14, 1
      %p99 = por %p97, %p98
      %p100 = scmp.ne.s32.totalorder %s92, %s95
      %p101 = scmp.eq.s32.totalorder %s14, 0
      %p102 = por %p100, %p101
      %p103 = scmp.ne.s32.totalorder %s92, %s95
      %p104 = scmp.eq.s32.totalorder %s19, 1
      %p105 = por %p103, %p104
      %p106 = scmp.ne.s32.totalorder %s95, %s96
      %p107 = scmp.eq.s32.totalorder %s19, 0
      %p108 = por %p106, %p107
      %p109 = scmp.ne.s32.totalorder %s95, %s96
      %p110 = scmp.eq.s32.totalorder %s20, 1
      %p111 = por %p109, %p110
      %p113 = scmp.ne.s32.totalorder %s96, %s112
      %p114 = scmp.eq.s32.totalorder %s20, 0
      %p115 = por %p113, %p114
      %p116 = scmp.le.s32.totalorder 1, %s14
      %p117 = scmp.lt.s32.totalorder %s14, 3
      %p118 = pnand %p116, %p117
      %p119 = pneg %p118
      // Predicated region
      $region9: #{tpu_custom_call.1} parent=5 // pred_check
        _
      $region10: #{tpu_custom_call.1} parent=5 // pred_check_branch
        %121 = sbr.rel (%p118) target = $region12
      $region11: #{tpu_custom_call.1} parent=5 // pred_region
        %s122 = ssub.s32 %s14, 1
      $region12: #{tpu_custom_call.1} parent=5 // pred_fallthru
        _
      %p123 = scmp.lt.s32.totalorder %s14, 2
      // Predicated region
      $region13: #{tpu_custom_call.1} parent=5 // pred_check
        %p124 = pneg %p123
      $region14: #{tpu_custom_call.1} parent=5 // pred_check_branch
        %126 = sbr.rel (%p124) target = $region16
      $region15: #{tpu_custom_call.1} parent=5 // pred_region
        // Predicated region
        $region17: #{tpu_custom_call.1} parent=15 // pred_check
          %p127 = pneg %p48
        $region18: #{tpu_custom_call.1} parent=15 // pred_check_branch
          %129 = sbr.rel (%p127) target = $region20
        $region19: #{tpu_custom_call.1} parent=15 // pred_region
          %s130 = sand.u32 %s38, 1
          %s131 = scalar_lea.sflag [#allocation6], %s130
          %s132 = sand.u32 %s38, 1
          %s133 = smul.addr %s132, 8
          %s134 = scalar_lea.vmem [#allocation5], %s133
          %s136 = ssub.s32 128, 128
          %137 = vsyncadd %s131, %s136
          %s138 = sadd.s32 %s22, %s21
          %s139 = smul.addr %s138, 128
          %s140 = scalar_lea.hbm %s0, %s139
          %s142 = sshll.u32 %s134, 4
          %s143 = int_to_ptr.vmem [resolvable:$true] %s142
          %145 = dma.hbm_to_vmem [thread:$0]  %s140, 128, %s143, %s131
        $region20: #{tpu_custom_call.1} parent=15 // pred_fallthru
          _
        // Predicated region
        $region21: #{tpu_custom_call.1} parent=15 // pred_check
          %p146 = pneg %p76
        $region22: #{tpu_custom_call.1} parent=15 // pred_check_branch
          %148 = sbr.rel (%p146) target = $region24
        $region23: #{tpu_custom_call.1} parent=15 // pred_region
          %s149 = sand.u32 %s66, 1
          %s150 = scalar_lea.sflag [#allocation8], %s149
          %s151 = sand.u32 %s66, 1
          %s152 = smul.addr %s151, 8
          %s153 = scalar_lea.vmem [#allocation7], %s152
          %s155 = ssub.s32 128, 128
          %156 = vsyncadd %s150, %s155
          %s157 = sadd.s32 %s22, %s21
          %s158 = smul.addr %s157, 128
          %s159 = scalar_lea.hbm %s1, %s158
          %s161 = sshll.u32 %s153, 4
          %s162 = int_to_ptr.vmem [resolvable:$true] %s161
          %164 = dma.hbm_to_vmem [thread:$0]  %s159, 128, %s162, %s150
        $region24: #{tpu_custom_call.1} parent=15 // pred_fallthru
          _
      $region16: #{tpu_custom_call.1} parent=5 // pred_fallthru
        _
      %p165 = scmp.le.s32.totalorder 1, %s14
      %p166 = scmp.lt.s32.totalorder %s14, 3
      %p167 = pnand %p165, %p166
      %p168 = pneg %p167
      // Predicated region
      $region25: #{tpu_custom_call.1} parent=5 // pred_check
        _
      $region26: #{tpu_custom_call.1} parent=5 // pred_check_branch
        %170 = sbr.rel (%p167) target = $region28
      $region27: #{tpu_custom_call.1} parent=5 // pred_region
        %s171 = ssub.s32 %s14, 1
        %s172 = sand.u32 %s41, 1
        %s173 = scalar_lea.sflag [#allocation6], %s172
        %s174 = sand.u32 %s41, 1
        %s175 = smul.addr %s174, 8
        %s176 = scalar_lea.vmem [#allocation5], %s175
        // Predicated region
        $region29: #{tpu_custom_call.1} parent=27 // pred_check
          %p177 = pneg %p54
        $region30: #{tpu_custom_call.1} parent=27 // pred_check_branch
          %179 = sbr.rel (%p177) target = $region32
        $region31: #{tpu_custom_call.1} parent=27 // pred_region
          %180 = dma.done %s173, 128
        $region32: #{tpu_custom_call.1} parent=27 // pred_fallthru
          _
        %s181 = sand.u32 %s69, 1
        %s182 = scalar_lea.sflag [#allocation8], %s181
        %s183 = sand.u32 %s69, 1
        %s184 = smul.addr %s183, 8
        %s185 = scalar_lea.vmem [#allocation7], %s184
        // Predicated region
        $region33: #{tpu_custom_call.1} parent=27 // pred_check
          %p186 = pneg %p82
        $region34: #{tpu_custom_call.1} parent=27 // pred_check_branch
          %188 = sbr.rel (%p186) target = $region36
        $region35: #{tpu_custom_call.1} parent=27 // pred_region
          %189 = dma.done %s182, 128
        $region36: #{tpu_custom_call.1} parent=27 // pred_fallthru
          _
        %s190 = sand.u32 %s41, 1
        %s191 = scalar_lea.sflag [#allocation6], %s190
        %s192 = sand.u32 %s41, 1
        %s193 = smul.addr %s192, 8
        %s194 = scalar_lea.vmem [#allocation5], %s193
        %p195 = pneg %p54
        %p196 = pneg %p51
        %s197 = sand.u32 %s69, 1
        %s198 = scalar_lea.sflag [#allocation8], %s197
        %s199 = sand.u32 %s69, 1
        %s200 = smul.addr %s199, 8
        %s201 = scalar_lea.vmem [#allocation7], %s200
        %p202 = pneg %p82
        %p203 = pneg %p79
        %p204 = pneg %p108
        %p205 = pneg %p105
        %p206 = scmp.lt.s32.totalorder %s23, 1
        %s207 = scalar_select %p206, %s23, 1
        %s208 = scalar_lea.vmem %s2, %s207
        %p209 = scmp.lt.s32.totalorder %s23, 1
        %s210 = scalar_select %p209, %s23, 1
        %s211 = scalar_lea.vmem %s2, %s210
        %p212 = scmp.eq.s32.totalorder %s24, 0
        // Predicated region
        $region37: #{tpu_custom_call.1} parent=27 // pred_check
          %p213 = pneg %p212
        $region38: #{tpu_custom_call.1} parent=27 // pred_check_branch
          %215 = sbr.rel (%p213) target = $region40
        $region39: #{tpu_custom_call.1} parent=27 // pred_region
          %216 = vst [vmem:[#allocation2] sm:$0xff] 0.0
          %217 = vst [vmem:[#allocation3] sm:$0xff] 0.0
          %218 = vst [vmem:[#allocation4] sm:$0xff] 0.0
        $region40: #{tpu_custom_call.1} parent=27 // pred_fallthru
          _
        %v219 = vld [vmem:[%s176] sm:$0xff]
        %v220 = vld [vmem:[%s185] sm:$0xff]
        %v221 = vxor.u32 %v219, 2147483648
        %v222 = vmul.f32 %v221, 1.442695
        %v223 = vpow.pop %v222
        %v224 = vadd.f32 %v223, 1.0
        %v225 = vrcp.pop %v224
        %v226 = vmul.f32 1.0, %v225
        %v227 = vld [vmem:[#allocation2] sm:$0xff]
        %v228 = vmul.f32 %v226, %v220
        %v229 = vadd.f32 %v227, %v228
        %230 = vst [vmem:[#allocation2] sm:$0xff] %v229
        %v231 = vld [vmem:[#allocation3] sm:$0xff]
        %v232 = vmul.f32 %v226, %v226
        %v233 = vadd.f32 %v231, %v232
        %234 = vst [vmem:[#allocation3] sm:$0xff] %v233
        %v235 = vld [vmem:[#allocation4] sm:$0xff]
        %v236 = vmul.f32 %v220, %v220
        %v237 = vadd.f32 %v235, %v236
        %238 = vst [vmem:[#allocation4] sm:$0xff] %v237
        // Predicated region
        $region41: #{tpu_custom_call.1} parent=27 // pred_check
          %p239 = pneg %p212
        $region42: #{tpu_custom_call.1} parent=27 // pred_check_branch
          %241 = sbr.rel (%p239) target = $region44
        $region43: #{tpu_custom_call.1} parent=27 // pred_region
          %v242 = vld [vmem:[#allocation2] sm:$0xff]
          %243 = vadd.xlane.f32.xlu0 %v242
          %v244 = vpop.xlane.xlu0 %243
          %v245 = vrot.slane %v244, 4
          %v246 = vadd.f32 %v244, %v245
          %v247 = vrot.slane %v246, 2
          %v248 = vadd.f32 %v246, %v247
          %v249 = vrot.slane %v248, 1
          %v250 = vadd.f32 %v248, %v249
          %s251 = vtos %v250
          %v252 = vstv %s251
          %v253 = vld [vmem:[#allocation3] sm:$0xff]
          %254 = vadd.xlane.f32.xlu0 %v253
          %v255 = vpop.xlane.xlu0 %254
          %v256 = vrot.slane %v255, 4
          %v257 = vadd.f32 %v255, %v256
          %v258 = vrot.slane %v257, 2
          %v259 = vadd.f32 %v257, %v258
          %v260 = vrot.slane %v259, 1
          %v261 = vadd.f32 %v259, %v260
          %s262 = vtos %v261
          %v263 = vstv %s262
          %v264 = vld [vmem:[#allocation4] sm:$0xff]
          %265 = vadd.xlane.f32.xlu0 %v264
          %v266 = vpop.xlane.xlu0 %265
          %v267 = vrot.slane %v266, 4
          %v268 = vadd.f32 %v266, %v267
          %v269 = vrot.slane %v268, 2
          %v270 = vadd.f32 %v268, %v269
          %v271 = vrot.slane %v270, 1
          %v272 = vadd.f32 %v270, %v271
          %s273 = vtos %v272
          %v274 = vstv %s273
          %v275 = vmul.f32 %v252, 2.0
          %v276 = vadd.f32 %v263, 0.001
          %v277 = vadd.f32 %v274, 0.001
          %v278 = vadd.f32 %v276, %v277
          %v279 = vrcp.pop %v278
          %v280 = vmul.f32 %v275, %v279
          %v281 = vsub.f32 1.0, %v280
          %vm282 = vcmask 0
          %283 = vst.msk [vmem:[%s211] sm:$0x1] %vm282, %v281
        $region44: #{tpu_custom_call.1} parent=27 // pred_fallthru
          _
        %p284 = scmp.lt.s32.totalorder %s23, 1
        %s285 = scalar_select %p284, %s23, 1
        %s286 = scalar_lea.vmem %s2, %s285
        // Predicated region
        $region45: #{tpu_custom_call.1} parent=27 // pred_check
          %p287 = pneg %p105
        $region46: #{tpu_custom_call.1} parent=27 // pred_check_branch
          %289 = sbr.rel (%p287) target = $region48
        $region47: #{tpu_custom_call.1} parent=27 // pred_region
          _
        $region48: #{tpu_custom_call.1} parent=27 // pred_fallthru
          _
      $region28: #{tpu_custom_call.1} parent=5 // pred_fallthru
        _
      %p290 = scmp.le.s32.totalorder 2, %s14
      // Predicated region
      $region49: #{tpu_custom_call.1} parent=5 // pred_check
        %p291 = pneg %p290
      $region50: #{tpu_custom_call.1} parent=5 // pred_check_branch
        %293 = sbr.rel (%p291) target = $region52
      $region51: #{tpu_custom_call.1} parent=5 // pred_region
        %s294 = ssub.s32 %s14, 2
        // Predicated region
        $region53: #{tpu_custom_call.1} parent=51 // pred_check
          %p295 = pneg %p111
        $region54: #{tpu_custom_call.1} parent=51 // pred_check_branch
          %297 = sbr.rel (%p295) target = $region56
        $region55: #{tpu_custom_call.1} parent=51 // pred_region
          %p298 = scmp.lt.s32.totalorder %s25, 1
          %s299 = scalar_select %p298, %s25, 1
          %s300 = scalar_lea.vmem %s2, %s299
        $region56: #{tpu_custom_call.1} parent=51 // pred_fallthru
          _
      $region52: #{tpu_custom_call.1} parent=5 // pred_fallthru
        _
    $region6: #{tpu_custom_call.1} parent=1 // loop_footer
      %s18 = sadd.s32 1, %s14
    $region7: #{tpu_custom_call.1} parent=1 // loop_footer_branch
      %13 = sbr.rel target = $region3
    $region8: #{tpu_custom_call.1} parent=1 // loop_exit
      _
    %301 = vsyncpa [#allocation6], 1
    %s302 = scalar_lea.sflag [#allocation6], 1
    %303 = vsyncpa %s302, 1
    %304 = vsyncpa [#allocation8], 1
    %s305 = scalar_lea.sflag [#allocation8], 1
    %306 = vsyncpa %s305, 1

</llo_original>
